<compile_context>
chip_gen: v5e
topology: v5e:2x2
jax: 0.10.0
libtpu: 0.0.40
codegen_flags: <defaults>
</compile_context>

<pallas_src>
import jax
import jax.numpy as jnp
from jax.experimental import pallas as pl
from jax.experimental.pallas import tpu as pltpu


# ----------------------------------------------------------------------------
# Helpers
# ----------------------------------------------------------------------------
def _round_up(x, m):
    return (x + m - 1) // m * m


def _pad2d(a, rows, cols):
    out = jnp.zeros((rows, cols), a.dtype)
    return out.at[: a.shape[0], : a.shape[1]].set(a)


# ----------------------------------------------------------------------------
# Fused SAGE_sup forward kernel (all operands VMEM-resident, single launch)
# ----------------------------------------------------------------------------
def _sage_sup_kernel(adj_ref, x_ref, w1l_ref, w1r_ref, b1_ref,
                     w2l_ref, w2r_ref, b2_ref, o_ref):
    bf16 = jnp.bfloat16
    adj = adj_ref[...].astype(bf16)          # (Np, Np)  row-normalized D^-1 A
    x = x_ref[...].astype(bf16)              # (Np, Fi_p)

    # ---- layer 1: h = relu( adj @ (x W1_l) + x W1_r + b1 ) -----------------
    xw_l = jnp.dot(x, w1l_ref[...].astype(bf16),
                   preferred_element_type=jnp.float32)
    agg1 = jnp.dot(adj, xw_l.astype(bf16),
                   preferred_element_type=jnp.float32)
    root1 = jnp.dot(x, w1r_ref[...].astype(bf16),
                    preferred_element_type=jnp.float32)
    h = jnp.maximum(agg1 + root1 + b1_ref[...], 0.0)   # f32 epilogue
    # TODO(synk): F.dropout(p=0.5) only acts in training; inference = identity.

    # ---- layer 2: out = sigmoid( adj @ (h W2_l) + h W2_r + b2 ) ------------
    h_b = h.astype(bf16)
    hw_l = jnp.dot(h_b, w2l_ref[...].astype(bf16),
                   preferred_element_type=jnp.float32)
    agg2 = jnp.dot(adj, hw_l.astype(bf16),
                   preferred_element_type=jnp.float32)
    root2 = jnp.dot(h_b, w2r_ref[...].astype(bf16),
                    preferred_element_type=jnp.float32)
    o_ref[...] = jax.nn.sigmoid(agg2 + root2 + b2_ref[...]).astype(o_ref.dtype)


def sage_sup_forward(params, x, adj_norm):
    """SAGE_sup forward.  x: [N, Fi] f32, adj_norm: [N, N] row-normalized."""
    N, Fi = x.shape
    H = params["w1_l"].shape[1]
    C = params["w2_l"].shape[1]

    # Pad: lanes (feature dims) -> x128, sublanes (nodes) -> x16 (bf16 packing).
    N_p = _round_up(N, 16)
    Fi_p = _round_up(Fi, 128)
    H_p = _round_up(H, 128)
    C_p = _round_up(C, 128)

    adj_p = _pad2d(adj_norm, N_p, N_p)
    x_p = _pad2d(x, N_p, Fi_p)
    w1l = _pad2d(params["w1_l"], Fi_p, H_p)
    w1r = _pad2d(params["w1_r"], Fi_p, H_p)
    b1 = _pad2d(params["b1"], 1, H_p)
    w2l = _pad2d(params["w2_l"], H_p, C_p)
    w2r = _pad2d(params["w2_r"], H_p, C_p)
    b2 = _pad2d(params["b2"], 1, C_p)

    full = lambda r, c: pl.BlockSpec((r, c), lambda i: (0, 0))
    out_p = pl.pallas_call(
        _sage_sup_kernel,
        out_shape=jax.ShapeDtypeStruct((N_p, C_p), jnp.float32),
        grid=(1,),
        in_specs=[
            full(N_p, N_p),    # adj
            full(N_p, Fi_p),   # x
            full(Fi_p, H_p),   # W1_l
            full(Fi_p, H_p),   # W1_r
            full(1, H_p),      # b1
            full(H_p, C_p),    # W2_l
            full(H_p, C_p),    # W2_r
            full(1, C_p),      # b2
        ],
        out_specs=full(N_p, C_p),
        compiler_params=pltpu.CompilerParams(
            dimension_semantics=("arbitrary",)),
    )(adj_p, x_p, w1l, w1r, b1, w2l, w2r, b2)

    return out_p[:N, :C]


# ----------------------------------------------------------------------------
# Glue: mean-aggregation adjacency from edge_index (PyG SAGEConv semantics)
# ----------------------------------------------------------------------------
def sage_mean_adj(edge_index, num_nodes, dtype=jnp.float32):
    src, dst = edge_index[0], edge_index[1]
    a = jnp.zeros((num_nodes, num_nodes), dtype=dtype)
    # message flows src -> dst; duplicates accumulate (scatter-add semantics)
    a = a.at[dst, src].add(1.0)
    deg = a.sum(axis=1)
    dinv = jnp.where(deg > 0, 1.0 / deg, 0.0)
    return dinv[:, None] * a                      # D^-1 A  (mean over in-edges)


# ----------------------------------------------------------------------------
# Parameters
# ----------------------------------------------------------------------------
def init_params(key, in_channels, hidden_channels, class_channels,
                dtype=jnp.float32):
    ks = jax.random.split(key, 4)

    def glorot(k, fi, fo):
        scale = jnp.sqrt(jnp.asarray(2.0 / (fi + fo), dtype))
        return jax.random.normal(k, (fi, fo), dtype) * scale

    return {
        "w1_l": glorot(ks[0], in_channels, hidden_channels),
        "w1_r": glorot(ks[1], in_channels, hidden_channels),
        "b1": jnp.zeros((1, hidden_channels), dtype),
        "w2_l": glorot(ks[2], hidden_channels, class_channels),
        "w2_r": glorot(ks[3], hidden_channels, class_channels),
        "b2": jnp.zeros((1, class_channels), dtype),
    }


# ----------------------------------------------------------------------------
if __name__ == "__main__":
    N_NODES, IN_CH, HIDDEN, CLASSES = 16, 8, 32, 4

    key = jax.random.PRNGKey(0)
    k_feat, k_par = jax.random.split(key)

    features = jax.random.normal(k_feat, (N_NODES, IN_CH), jnp.float32)

    # simple undirected ring graph
    src = jnp.arange(N_NODES, dtype=jnp.int32)
    dst = (src + 1) % N_NODES
    edge_index = jnp.stack(
        [jnp.concatenate([src, dst]), jnp.concatenate([dst, src])], axis=0
    )  # [2, 2N]

    adj = sage_mean_adj(edge_index, N_NODES)
    params = init_params(k_par, IN_CH, HIDDEN, CLASSES)

    fwd = jax.jit(sage_sup_forward)
    out = fwd(params, features, adj)
    out = jax.block_until_ready(out)

    assert out.shape == (N_NODES, CLASSES)
    assert bool(jnp.all(jnp.isfinite(out)))
    assert bool(jnp.all((out >= 0.0) & (out <= 1.0)))  # sigmoid range
    print("KERNEL_OK")
</pallas_src>

<mosaic_0001>
module attributes {stable_mosaic.version = 11 : i64} {
  func.func @_sage_sup_kernel(%arg0: i32, %arg1: memref<16x16xf32, #tpu.memory_space<vmem>>, %arg2: memref<16x128xf32, #tpu.memory_space<vmem>>, %arg3: memref<128x128xf32, #tpu.memory_space<vmem>>, %arg4: memref<128x128xf32, #tpu.memory_space<vmem>>, %arg5: memref<1x128xf32, #tpu.memory_space<vmem>>, %arg6: memref<128x128xf32, #tpu.memory_space<vmem>>, %arg7: memref<128x128xf32, #tpu.memory_space<vmem>>, %arg8: memref<1x128xf32, #tpu.memory_space<vmem>>, %arg9: memref<16x128xf32, #tpu.memory_space<vmem>>) attributes {dimension_semantics = [#tpu.dimension_semantics<arbitrary>], iteration_bounds = array<i64: 1>, scalar_prefetch = 0 : i64, scratch_operands = 0 : i64, tpu.core_type = #tpu.core_type<tc>, window_params = [{pipeline_mode = #tpu.pipeline_mode<synchronous>, transform_indices = @transform_0, window_bounds = array<i64: 16, 16>}, {pipeline_mode = #tpu.pipeline_mode<synchronous>, transform_indices = @transform_1, window_bounds = array<i64: 16, 128>}, {pipeline_mode = #tpu.pipeline_mode<synchronous>, transform_indices = @transform_2, window_bounds = array<i64: 128, 128>}, {pipeline_mode = #tpu.pipeline_mode<synchronous>, transform_indices = @transform_3, window_bounds = array<i64: 128, 128>}, {pipeline_mode = #tpu.pipeline_mode<synchronous>, transform_indices = @transform_4, window_bounds = array<i64: 1, 128>}, {pipeline_mode = #tpu.pipeline_mode<synchronous>, transform_indices = @transform_5, window_bounds = array<i64: 128, 128>}, {pipeline_mode = #tpu.pipeline_mode<synchronous>, transform_indices = @transform_6, window_bounds = array<i64: 128, 128>}, {pipeline_mode = #tpu.pipeline_mode<synchronous>, transform_indices = @transform_7, window_bounds = array<i64: 1, 128>}, {pipeline_mode = #tpu.pipeline_mode<synchronous>, transform_indices = @transform_8, window_bounds = array<i64: 16, 128>}]} {
    %c0 = arith.constant 0 : index
    %c0_0 = arith.constant 0 : index
    %0 = vector.load %arg1[%c0, %c0_0] : memref<16x16xf32, #tpu.memory_space<vmem>>, vector<16x16xf32>
    %1 = arith.truncf %0 : vector<16x16xf32> to vector<16x16xbf16>
    %c0_1 = arith.constant 0 : index
    %c0_2 = arith.constant 0 : index
    %2 = vector.load %arg2[%c0_1, %c0_2] : memref<16x128xf32, #tpu.memory_space<vmem>>, vector<16x128xf32>
    %3 = arith.truncf %2 : vector<16x128xf32> to vector<16x128xbf16>
    %c0_3 = arith.constant 0 : index
    %c0_4 = arith.constant 0 : index
    %4 = vector.load %arg3[%c0_3, %c0_4] : memref<128x128xf32, #tpu.memory_space<vmem>>, vector<128x128xf32>
    %5 = arith.truncf %4 : vector<128x128xf32> to vector<128x128xbf16>
    %cst = arith.constant dense<0.000000e+00> : vector<16x128xf32>
    %6 = tpu.matmul %3, %5, %cst {dimension_numbers = #tpu.dot_dimension_numbers<[1], [0], [0], [1], [0, 0, 1, 1], [], []>} : vector<16x128xbf16>, vector<128x128xbf16>, vector<16x128xf32> -> vector<16x128xf32>
    %7 = arith.truncf %6 : vector<16x128xf32> to vector<16x128xbf16>
    %cst_5 = arith.constant dense<0.000000e+00> : vector<16x128xf32>
    %8 = tpu.matmul %1, %7, %cst_5 {dimension_numbers = #tpu.dot_dimension_numbers<[1], [0], [0], [1], [0, 0, 1, 1], [], []>} : vector<16x16xbf16>, vector<16x128xbf16>, vector<16x128xf32> -> vector<16x128xf32>
    %c0_6 = arith.constant 0 : index
    %c0_7 = arith.constant 0 : index
    %9 = vector.load %arg4[%c0_6, %c0_7] : memref<128x128xf32, #tpu.memory_space<vmem>>, vector<128x128xf32>
    %10 = arith.truncf %9 : vector<128x128xf32> to vector<128x128xbf16>
    %cst_8 = arith.constant dense<0.000000e+00> : vector<16x128xf32>
    %11 = tpu.matmul %3, %10, %cst_8 {dimension_numbers = #tpu.dot_dimension_numbers<[1], [0], [0], [1], [0, 0, 1, 1], [], []>} : vector<16x128xbf16>, vector<128x128xbf16>, vector<16x128xf32> -> vector<16x128xf32>
    %12 = arith.addf %8, %11 : vector<16x128xf32>
    %c0_9 = arith.constant 0 : index
    %c0_10 = arith.constant 0 : index
    %13 = vector.load %arg5[%c0_9, %c0_10] : memref<1x128xf32, #tpu.memory_space<vmem>>, vector<1x128xf32>
    %14 = vector.broadcast %13 : vector<1x128xf32> to vector<16x128xf32>
    %15 = arith.addf %12, %14 : vector<16x128xf32>
    %cst_11 = arith.constant 0.000000e+00 : f32
    %16 = vector.broadcast %cst_11 : f32 to vector<16x128xf32>
    %17 = arith.maximumf %15, %16 : vector<16x128xf32>
    %18 = arith.truncf %17 : vector<16x128xf32> to vector<16x128xbf16>
    %c0_12 = arith.constant 0 : index
    %c0_13 = arith.constant 0 : index
    %19 = vector.load %arg6[%c0_12, %c0_13] : memref<128x128xf32, #tpu.memory_space<vmem>>, vector<128x128xf32>
    %20 = arith.truncf %19 : vector<128x128xf32> to vector<128x128xbf16>
    %cst_14 = arith.constant dense<0.000000e+00> : vector<16x128xf32>
    %21 = tpu.matmul %18, %20, %cst_14 {dimension_numbers = #tpu.dot_dimension_numbers<[1], [0], [0], [1], [0, 0, 1, 1], [], []>} : vector<16x128xbf16>, vector<128x128xbf16>, vector<16x128xf32> -> vector<16x128xf32>
    %22 = arith.truncf %21 : vector<16x128xf32> to vector<16x128xbf16>
    %cst_15 = arith.constant dense<0.000000e+00> : vector<16x128xf32>
    %23 = tpu.matmul %1, %22, %cst_15 {dimension_numbers = #tpu.dot_dimension_numbers<[1], [0], [0], [1], [0, 0, 1, 1], [], []>} : vector<16x16xbf16>, vector<16x128xbf16>, vector<16x128xf32> -> vector<16x128xf32>
    %c0_16 = arith.constant 0 : index
    %c0_17 = arith.constant 0 : index
    %24 = vector.load %arg7[%c0_16, %c0_17] : memref<128x128xf32, #tpu.memory_space<vmem>>, vector<128x128xf32>
    %25 = arith.truncf %24 : vector<128x128xf32> to vector<128x128xbf16>
    %cst_18 = arith.constant dense<0.000000e+00> : vector<16x128xf32>
    %26 = tpu.matmul %18, %25, %cst_18 {dimension_numbers = #tpu.dot_dimension_numbers<[1], [0], [0], [1], [0, 0, 1, 1], [], []>} : vector<16x128xbf16>, vector<128x128xbf16>, vector<16x128xf32> -> vector<16x128xf32>
    %27 = arith.addf %23, %26 : vector<16x128xf32>
    %c0_19 = arith.constant 0 : index
    %c0_20 = arith.constant 0 : index
    %28 = vector.load %arg8[%c0_19, %c0_20] : memref<1x128xf32, #tpu.memory_space<vmem>>, vector<1x128xf32>
    %29 = vector.broadcast %28 : vector<1x128xf32> to vector<16x128xf32>
    %30 = arith.addf %27, %29 : vector<16x128xf32>
    %31 = arith.negf %30 : vector<16x128xf32>
    %32 = math.exp %31 : vector<16x128xf32>
    %cst_21 = arith.constant 1.000000e+00 : f32
    %33 = vector.broadcast %cst_21 : f32 to vector<16x128xf32>
    %34 = arith.addf %33, %32 : vector<16x128xf32>
    %35 = arith.divf %33, %34 : vector<16x128xf32>
    %c0_22 = arith.constant 0 : index
    %c0_23 = arith.constant 0 : index
    %36 = vector.load %arg9[%c0_22, %c0_23] : memref<16x128xf32, #tpu.memory_space<vmem>>, vector<16x128xf32>
    tpu.vector_store %arg9[%c0_22, %c0_23], %35 {strides = array<i32>} : memref<16x128xf32, #tpu.memory_space<vmem>>, vector<16x128xf32>,
    return
  }
  func.func @transform_0(%arg0: i32) -> (i32, i32) {
    %c0_i32 = arith.constant 0 : i32
    %c0_i32_0 = arith.constant 0 : i32
    %c0_i32_1 = arith.constant 0 : i32
    return %c0_i32, %c0_i32_0 : i32, i32
  }
  func.func @transform_1(%arg0: i32) -> (i32, i32) {
    %c0_i32 = arith.constant 0 : i32
    %c0_i32_0 = arith.constant 0 : i32
    %c0_i32_1 = arith.constant 0 : i32
    return %c0_i32, %c0_i32_0 : i32, i32
  }
  func.func @transform_2(%arg0: i32) -> (i32, i32) {
    %c0_i32 = arith.constant 0 : i32
    %c0_i32_0 = arith.constant 0 : i32
    %c0_i32_1 = arith.constant 0 : i32
    return %c0_i32, %c0_i32_0 : i32, i32
  }
  func.func @transform_3(%arg0: i32) -> (i32, i32) {
    %c0_i32 = arith.constant 0 : i32
    %c0_i32_0 = arith.constant 0 : i32
    %c0_i32_1 = arith.constant 0 : i32
    return %c0_i32, %c0_i32_0 : i32, i32
  }
  func.func @transform_4(%arg0: i32) -> (i32, i32) {
    %c0_i32 = arith.constant 0 : i32
    %c0_i32_0 = arith.constant 0 : i32
    %c0_i32_1 = arith.constant 0 : i32
    return %c0_i32, %c0_i32_0 : i32, i32
  }
  func.func @transform_5(%arg0: i32) -> (i32, i32) {
    %c0_i32 = arith.constant 0 : i32
    %c0_i32_0 = arith.constant 0 : i32
    %c0_i32_1 = arith.constant 0 : i32
    return %c0_i32, %c0_i32_0 : i32, i32
  }
  func.func @transform_6(%arg0: i32) -> (i32, i32) {
    %c0_i32 = arith.constant 0 : i32
    %c0_i32_0 = arith.constant 0 : i32
    %c0_i32_1 = arith.constant 0 : i32
    return %c0_i32, %c0_i32_0 : i32, i32
  }
  func.func @transform_7(%arg0: i32) -> (i32, i32) {
    %c0_i32 = arith.constant 0 : i32
    %c0_i32_0 = arith.constant 0 : i32
    %c0_i32_1 = arith.constant 0 : i32
    return %c0_i32, %c0_i32_0 : i32, i32
  }
  func.func @transform_8(%arg0: i32) -> (i32, i32) {
    %c0_i32 = arith.constant 0 : i32
    %c0_i32_0 = arith.constant 0 : i32
    %c0_i32_1 = arith.constant 0 : i32
    return %c0_i32, %c0_i32_0 : i32, i32
  }
}

</mosaic_0001>

<llo_original>
// kernel: sage_sup_forward.1
$region0: #{sage_sup_forward.1}
  #allocation0 [shape = 'u32[]', space=smem, size = 0x4, offset = 0x4, fixed_abs, tag = 'smem constant byte address 0x4 - core index']
  #allocation1 [shape = 'u32[72,128]{1,0:T(1,128)}', space=vmem, size = 0x9000, scoped, tag = 'internal scratch']
  %s0 = inlined_call_operand.vmem [shape: f32[16,16], index: 0, kind: input, shape index: {}]
  %s1 = inlined_call_operand.vmem [shape: f32[16,128], index: 1, kind: input, shape index: {}]
  %s2 = inlined_call_operand.vmem [shape: f32[128,128], index: 2, kind: input, shape index: {}]
  %s3 = inlined_call_operand.vmem [shape: f32[128,128], index: 3, kind: input, shape index: {}]
  %s4 = inlined_call_operand.vmem [shape: f32[1,128], index: 4, kind: input, shape index: {}]
  %s5 = inlined_call_operand.vmem [shape: f32[128,128], index: 5, kind: input, shape index: {}]
  %s6 = inlined_call_operand.vmem [shape: f32[128,128], index: 6, kind: input, shape index: {}]
  %s7 = inlined_call_operand.vmem [shape: f32[1,128], index: 7, kind: input, shape index: {}]
  %s8 = inlined_call_operand.vmem [shape: f32[16,128], index: 8, kind: output, shape index: {}]
  %s9 = sld [smem:[#allocation0]]
  $region42: #{sage_sup_forward.1} parent=0
    _
  %s11 = ssub.s32 1, %s9
  %s12 = scalar_select 0, %s11, %s9
  // Predicated region
  $region2: #{sage_sup_forward.1} parent=0 // pred_check
    _
  $region3: #{sage_sup_forward.1} parent=0 // pred_check_branch
    %14 = sbr.rel (0) target = $region5
  $region4: #{sage_sup_forward.1} parent=0 // pred_region
    _
  $region5: #{sage_sup_forward.1} parent=0 // pred_fallthru
    _
  // Predicated region
  $region6: #{sage_sup_forward.1} parent=0 // pred_check
    _
  $region7: #{sage_sup_forward.1} parent=0 // pred_check_branch
    %16 = sbr.rel (0) target = $region9
  $region8: #{sage_sup_forward.1} parent=0 // pred_region
    _
  $region9: #{sage_sup_forward.1} parent=0 // pred_fallthru
    _
  // Predicated region
  $region10: #{sage_sup_forward.1} parent=0 // pred_check
    _
  $region11: #{sage_sup_forward.1} parent=0 // pred_check_branch
    %18 = sbr.rel (0) target = $region13
  $region12: #{sage_sup_forward.1} parent=0 // pred_region
    _
  $region13: #{sage_sup_forward.1} parent=0 // pred_fallthru
    _
  // Predicated region
  $region14: #{sage_sup_forward.1} parent=0 // pred_check
    _
  $region15: #{sage_sup_forward.1} parent=0 // pred_check_branch
    %20 = sbr.rel (0) target = $region17
  $region16: #{sage_sup_forward.1} parent=0 // pred_region
    _
  $region17: #{sage_sup_forward.1} parent=0 // pred_fallthru
    _
  // Predicated region
  $region18: #{sage_sup_forward.1} parent=0 // pred_check
    _
  $region19: #{sage_sup_forward.1} parent=0 // pred_check_branch
    %22 = sbr.rel (0) target = $region21
  $region20: #{sage_sup_forward.1} parent=0 // pred_region
    _
  $region21: #{sage_sup_forward.1} parent=0 // pred_fallthru
    _
  // Predicated region
  $region22: #{sage_sup_forward.1} parent=0 // pred_check
    _
  $region23: #{sage_sup_forward.1} parent=0 // pred_check_branch
    %24 = sbr.rel (0) target = $region25
  $region24: #{sage_sup_forward.1} parent=0 // pred_region
    _
  $region25: #{sage_sup_forward.1} parent=0 // pred_fallthru
    _
  // Predicated region
  $region26: #{sage_sup_forward.1} parent=0 // pred_check
    _
  $region27: #{sage_sup_forward.1} parent=0 // pred_check_branch
    %26 = sbr.rel (0) target = $region29
  $region28: #{sage_sup_forward.1} parent=0 // pred_region
    _
  $region29: #{sage_sup_forward.1} parent=0 // pred_fallthru
    _
  // Predicated region
  $region30: #{sage_sup_forward.1} parent=0 // pred_check
    _
  $region31: #{sage_sup_forward.1} parent=0 // pred_check_branch
    %28 = sbr.rel (0) target = $region33
  $region32: #{sage_sup_forward.1} parent=0 // pred_region
    _
  $region33: #{sage_sup_forward.1} parent=0 // pred_fallthru
    _
  %v30 = vld [vmem:[%s0] sm:$0xff]
  %v31 = vld [vmem:[%s0 + $0x8] sm:$0xff]
  %v32 = vpack.c.bf16 %v31, %v30
  %v33 = vld [vmem:[%s1] sm:$0xff]
  %v34 = vld [vmem:[%s1 + $0x8] sm:$0xff]
  %v35 = vpack.c.bf16 %v34, %v33
  %v36 = vld [vmem:[%s2] sm:$0xff]
  %v37 = vld [vmem:[%s2 + $0x8] sm:$0xff]
  %v38 = vld [vmem:[%s2 + $0x10] sm:$0xff]
  %v39 = vld [vmem:[%s2 + $0x18] sm:$0xff]
  %v40 = vld [vmem:[%s2 + $0x20] sm:$0xff]
  %v41 = vld [vmem:[%s2 + $0x28] sm:$0xff]
  %v42 = vld [vmem:[%s2 + $0x30] sm:$0xff]
  %v43 = vld [vmem:[%s2 + $0x38] sm:$0xff]
  %v44 = vld [vmem:[%s2 + $0x40] sm:$0xff]
  %v45 = vld [vmem:[%s2 + $0x48] sm:$0xff]
  %v46 = vld [vmem:[%s2 + $0x50] sm:$0xff]
  %v47 = vld [vmem:[%s2 + $0x58] sm:$0xff]
  %v48 = vld [vmem:[%s2 + $0x60] sm:$0xff]
  %v49 = vld [vmem:[%s2 + $0x68] sm:$0xff]
  %v50 = vld [vmem:[%s2 + $0x70] sm:$0xff]
  %v51 = vld [vmem:[%s2 + $0x78] sm:$0xff]
  %v52 = vpack.c.bf16 %v37, %v36
  %v53 = vpack.c.bf16 %v39, %v38
  %v54 = vpack.c.bf16 %v41, %v40
  %v55 = vpack.c.bf16 %v43, %v42
  %v56 = vpack.c.bf16 %v45, %v44
  %v57 = vpack.c.bf16 %v47, %v46
  %v58 = vpack.c.bf16 %v49, %v48
  %v59 = vpack.c.bf16 %v51, %v50
  %60 = vmatpush.bf16.msra.mxu0 %v59
  %61 = vmatpush.bf16.msra.mxu0 %v58
  %62 = vmatpush.bf16.msra.mxu0 %v57
  %63 = vmatpush.bf16.msra.mxu0 %v56
  %64 = vmatpush.bf16.msra.mxu0 %v55
  %65 = vmatpush.bf16.msra.mxu0 %v54
  %66 = vmatpush.bf16.msra.mxu0 %v53
  %67 = vmatpush.bf16.msra.mxu0 %v52
  %68 = vmatmul.bf16.gmra.mxu0 %v35
  %v69 = vpop.f32.mrf.mxu0
  %v70 = vadd.f32 0.0, %v69
  %v71 = vpop.f32.mrf.mxu0
  %v72 = vadd.f32 0.0, %v71
  %73 = vdwg.mxu0
  %v74 = vpack.c.bf16 %v72, %v70
  %v75 = vld [vmem:[%s3] sm:$0xff]
  %v76 = vld [vmem:[%s3 + $0x8] sm:$0xff]
  %v77 = vld [vmem:[%s3 + $0x10] sm:$0xff]
  %v78 = vld [vmem:[%s3 + $0x18] sm:$0xff]
  %v79 = vld [vmem:[%s3 + $0x20] sm:$0xff]
  %v80 = vld [vmem:[%s3 + $0x28] sm:$0xff]
  %v81 = vld [vmem:[%s3 + $0x30] sm:$0xff]
  %v82 = vld [vmem:[%s3 + $0x38] sm:$0xff]
  %v83 = vld [vmem:[%s3 + $0x40] sm:$0xff]
  %v84 = vld [vmem:[%s3 + $0x48] sm:$0xff]
  %v85 = vld [vmem:[%s3 + $0x50] sm:$0xff]
  %v86 = vld [vmem:[%s3 + $0x58] sm:$0xff]
  %v87 = vld [vmem:[%s3 + $0x60] sm:$0xff]
  %v88 = vld [vmem:[%s3 + $0x68] sm:$0xff]
  %v89 = vld [vmem:[%s3 + $0x70] sm:$0xff]
  %v90 = vld [vmem:[%s3 + $0x78] sm:$0xff]
  %v91 = vpack.c.bf16 %v76, %v75
  %v92 = vpack.c.bf16 %v78, %v77
  %v93 = vpack.c.bf16 %v80, %v79
  %v94 = vpack.c.bf16 %v82, %v81
  %v95 = vpack.c.bf16 %v84, %v83
  %v96 = vpack.c.bf16 %v86, %v85
  %v97 = vpack.c.bf16 %v88, %v87
  %v98 = vpack.c.bf16 %v90, %v89
  %99 = vmatpush.bf16.msra.mxu0 %v98
  %100 = vmatpush.bf16.msra.mxu0 %v97
  %101 = vmatpush.bf16.msra.mxu0 %v96
  %102 = vmatpush.bf16.msra.mxu0 %v95
  %103 = vmatpush.bf16.msra.mxu0 %v94
  %104 = vmatpush.bf16.msra.mxu0 %v93
  %105 = vmatpush.bf16.msra.mxu0 %v92
  %106 = vmatpush.bf16.msra.mxu0 %v91
  %107 = vmatmul.bf16.gmra.mxu0 %v35
  %v108 = vpop.f32.mrf.mxu0
  %v109 = vadd.f32 0.0, %v108
  %v110 = vpop.f32.mrf.mxu0
  %v111 = vadd.f32 0.0, %v110
  %112 = vdwg.mxu0
  %vm113 = vcmask 130048
  %v115 = vsel %vm113, %v32, 0
  %117 = vmatpush.bf16.msra.mxu0 0
  %118 = vmatpush.bf16.msra.mxu0 0
  %119 = vmatpush.bf16.msra.mxu0 0
  %120 = vmatpush.bf16.msra.mxu0 0
  %121 = vmatpush.bf16.msra.mxu0 0
  %122 = vmatpush.bf16.msra.mxu0 0
  %123 = vmatpush.bf16.msra.mxu0 0
  %124 = vmatpush.bf16.msra.mxu0 %v74
  %125 = vmatmul.bf16.gmra.mxu0 %v115
  %v126 = vpop.f32.mrf.mxu0
  %v127 = vadd.f32 %v109, %v126
  %v128 = vpop.f32.mrf.mxu0
  %v129 = vadd.f32 %v111, %v128
  %130 = vdwg.mxu0
  %v131 = vld [vmem:[%s4] sm:$0x1]
  %v133 = vperm.slane %v131, 0
  %v135 = vadd.f32 %v127, %v133
  %v136 = vadd.f32 %v129, %v133
  %v137 = vmax.f32 %v135, 0.0
  %v138 = vmax.f32 %v136, 0.0
  %v139 = vpack.c.bf16 %v138, %v137
  %v140 = vld [vmem:[%s5] sm:$0xff]
  %v141 = vld [vmem:[%s5 + $0x8] sm:$0xff]
  %v142 = vld [vmem:[%s5 + $0x10] sm:$0xff]
  %v143 = vld [vmem:[%s5 + $0x18] sm:$0xff]
  %v144 = vld [vmem:[%s5 + $0x20] sm:$0xff]
  %v145 = vld [vmem:[%s5 + $0x28] sm:$0xff]
  %v146 = vld [vmem:[%s5 + $0x30] sm:$0xff]
  %v147 = vld [vmem:[%s5 + $0x38] sm:$0xff]
  %v148 = vld [vmem:[%s5 + $0x40] sm:$0xff]
  %v149 = vld [vmem:[%s5 + $0x48] sm:$0xff]
  %v150 = vld [vmem:[%s5 + $0x50] sm:$0xff]
  %v151 = vld [vmem:[%s5 + $0x58] sm:$0xff]
  %v152 = vld [vmem:[%s5 + $0x60] sm:$0xff]
  %v153 = vld [vmem:[%s5 + $0x68] sm:$0xff]
  %v154 = vld [vmem:[%s5 + $0x70] sm:$0xff]
  %v155 = vld [vmem:[%s5 + $0x78] sm:$0xff]
  %v156 = vpack.c.bf16 %v141, %v140
  %v157 = vpack.c.bf16 %v143, %v142
  %v158 = vpack.c.bf16 %v145, %v144
  %v159 = vpack.c.bf16 %v147, %v146
  %v160 = vpack.c.bf16 %v149, %v148
  %v161 = vpack.c.bf16 %v151, %v150
  %v162 = vpack.c.bf16 %v153, %v152
  %v163 = vpack.c.bf16 %v155, %v154
  %164 = vmatpush.bf16.msra.mxu0 %v163
  %165 = vmatpush.bf16.msra.mxu0 %v162
  %166 = vmatpush.bf16.msra.mxu0 %v161
  %167 = vmatpush.bf16.msra.mxu0 %v160
  %168 = vmatpush.bf16.msra.mxu0 %v159
  %169 = vmatpush.bf16.msra.mxu0 %v158
  %170 = vmatpush.bf16.msra.mxu0 %v157
  %171 = vmatpush.bf16.msra.mxu0 %v156
  %172 = vmatmul.bf16.gmra.mxu0 %v139
  %v173 = vpop.f32.mrf.mxu0
  %v174 = vadd.f32 0.0, %v173
  %v175 = vpop.f32.mrf.mxu0
  %v176 = vadd.f32 0.0, %v175
  %177 = vdwg.mxu0
  %v178 = vpack.c.bf16 %v176, %v174
  %v179 = vld [vmem:[%s6] sm:$0xff]
  %v180 = vld [vmem:[%s6 + $0x8] sm:$0xff]
  %v181 = vld [vmem:[%s6 + $0x10] sm:$0xff]
  %v182 = vld [vmem:[%s6 + $0x18] sm:$0xff]
  %v183 = vld [vmem:[%s6 + $0x20] sm:$0xff]
  %v184 = vld [vmem:[%s6 + $0x28] sm:$0xff]
  %v185 = vld [vmem:[%s6 + $0x30] sm:$0xff]
  %v186 = vld [vmem:[%s6 + $0x38] sm:$0xff]
  %v187 = vld [vmem:[%s6 + $0x40] sm:$0xff]
  %v188 = vld [vmem:[%s6 + $0x48] sm:$0xff]
  %v189 = vld [vmem:[%s6 + $0x50] sm:$0xff]
  %v190 = vld [vmem:[%s6 + $0x58] sm:$0xff]
  %v191 = vld [vmem:[%s6 + $0x60] sm:$0xff]
  %v192 = vld [vmem:[%s6 + $0x68] sm:$0xff]
  %v193 = vld [vmem:[%s6 + $0x70] sm:$0xff]
  %v194 = vld [vmem:[%s6 + $0x78] sm:$0xff]
  %v195 = vpack.c.bf16 %v180, %v179
  %v196 = vpack.c.bf16 %v182, %v181
  %v197 = vpack.c.bf16 %v184, %v183
  %v198 = vpack.c.bf16 %v186, %v185
  %v199 = vpack.c.bf16 %v188, %v187
  %v200 = vpack.c.bf16 %v190, %v189
  %v201 = vpack.c.bf16 %v192, %v191
  %v202 = vpack.c.bf16 %v194, %v193
  %203 = vmatpush.bf16.msra.mxu0 %v202
  %204 = vmatpush.bf16.msra.mxu0 %v201
  %205 = vmatpush.bf16.msra.mxu0 %v200
  %206 = vmatpush.bf16.msra.mxu0 %v199
  %207 = vmatpush.bf16.msra.mxu0 %v198
  %208 = vmatpush.bf16.msra.mxu0 %v197
  %209 = vmatpush.bf16.msra.mxu0 %v196
  %210 = vmatpush.bf16.msra.mxu0 %v195
  %211 = vmatmul.bf16.gmra.mxu0 %v139
  %v212 = vpop.f32.mrf.mxu0
  %v213 = vadd.f32 0.0, %v212
  %v214 = vpop.f32.mrf.mxu0
  %v215 = vadd.f32 0.0, %v214
  %216 = vdwg.mxu0
  %217 = vmatpush.bf16.msra.mxu0 0
  %218 = vmatpush.bf16.msra.mxu0 0
  %219 = vmatpush.bf16.msra.mxu0 0
  %220 = vmatpush.bf16.msra.mxu0 0
  %221 = vmatpush.bf16.msra.mxu0 0
  %222 = vmatpush.bf16.msra.mxu0 0
  %223 = vmatpush.bf16.msra.mxu0 0
  %224 = vmatpush.bf16.msra.mxu0 %v178
  %225 = vmatmul.bf16.gmra.mxu0 %v115
  %v226 = vpop.f32.mrf.mxu0
  %v227 = vadd.f32 %v213, %v226
  %v228 = vpop.f32.mrf.mxu0
  %v229 = vadd.f32 %v215, %v228
  %230 = vdwg.mxu0
  %v231 = vld [vmem:[%s7] sm:$0x1]
  %v233 = vperm.slane %v231, 0
  %v235 = vadd.f32 %v227, %v233
  %v236 = vadd.f32 %v229, %v233
  %v237 = vxor.u32 %v235, 2147483648
  %v238 = vxor.u32 %v236, 2147483648
  %v239 = vmul.f32 %v237, 1.442695
  %v240 = vpow.pop %v239
  %v241 = vmul.f32 %v238, 1.442695
  %v242 = vpow.pop %v241
  %v243 = vadd.f32 %v240, 1.0
  %v244 = vadd.f32 %v242, 1.0
  %v245 = vrcp.pop %v243
  %v246 = vmul.f32 %v243, %v245
  %v247 = vsub.f32 1.0, %v246
  %v248 = vmul.f32 %v245, %v247
  %v249 = vadd.f32 %v245, %v248
  %vm250 = vweird.f32 %v243
  %vm251 = vweird.f32 %v245
  %vm252 = vmor %vm250, %vm251
  %v253 = vsel %vm252, %v245, %v249
  %v254 = vand.u32 2147483647, %v243
  %vm255 = vcmp.eq.f32.partialorder %v254, 8.507059e+37
  %v256 = vand.u32 %v243, 2147483648
  %v257 = vor.u32 1.1754944e-38, %v256
  %v258 = vsel %vm255, %v257, %v253
  %v259 = vmul.f32 1.0, %v258
  %v260 = vrcp.pop %v244
  %v261 = vmul.f32 %v244, %v260
  %v262 = vsub.f32 1.0, %v261
  %v263 = vmul.f32 %v260, %v262
  %v264 = vadd.f32 %v260, %v263
  %vm265 = vweird.f32 %v244
  %vm266 = vweird.f32 %v260
  %vm267 = vmor %vm265, %vm266
  %v268 = vsel %vm267, %v260, %v264
  %v269 = vand.u32 2147483647, %v244
  %vm270 = vcmp.eq.f32.partialorder %v269, 8.507059e+37
  %v271 = vand.u32 %v244, 2147483648
  %v272 = vor.u32 1.1754944e-38, %v271
  %v273 = vsel %vm270, %v272, %v268
  %v274 = vmul.f32 1.0, %v273
  %275 = vst [vmem:[%s8] sm:$0xff] %v259
  %276 = vst [vmem:[%s8 + $0x8] sm:$0xff] %v274
  // Predicated region
  $region34: #{sage_sup_forward.1} parent=0 // pred_check
    _
  $region35: #{sage_sup_forward.1} parent=0 // pred_check_branch
    %278 = sbr.rel (0) target = $region37
  $region36: #{sage_sup_forward.1} parent=0 // pred_region
    _
  $region37: #{sage_sup_forward.1} parent=0 // pred_fallthru
    _
  // Predicated region
  $region38: #{sage_sup_forward.1} parent=0 // pred_check
    _
  $region39: #{sage_sup_forward.1} parent=0 // pred_check_branch
    %280 = sbr.rel (0) target = $region41
  $region40: #{sage_sup_forward.1} parent=0 // pred_region
    _
  $region41: #{sage_sup_forward.1} parent=0 // pred_fallthru
    _

</llo_original>
